<compile_context>
chip_gen: v6e
topology: v6e:2x2x1
jax: 0.10.0
libtpu: 0.0.40
codegen_flags: <defaults>
</compile_context>

<pallas_src>
import functools

import jax
import jax.numpy as jnp
from jax.experimental import pallas as pl
from jax.experimental.pallas import tpu as pltpu

LANE = 128
SUBLANE = 8


def _round_up(x, m):
    return ((x + m - 1) // m) * m


def _pick_f_chunk(f_dim):
    """F-chunk (multiple of 8, <= 512) that exactly divides the 8-padded F."""
    fp = _round_up(f_dim, SUBLANE)
    for c in range(min(512, fp), 0, -SUBLANE):
        if fp % c == 0:
            return c, fp
    return fp, fp


def _npi_loss_kernel(pred_ref, true_ref, wft_ref, tgt_ref, bias_ref, coeff_ref,
                     out_ref, logits_acc, mse_acc,
                     *, boost, mse_scale, matmul_dtype, mse_chunk):
    f = pl.program_id(1)

    @pl.when(f == 0)
    def _init():
        logits_acc[...] = jnp.zeros_like(logits_acc)
        mse_acc[...] = jnp.zeros_like(mse_acc)

    # Fused dual-head matmul on the MXU (bf16 operands by default, f32 acc):
    #   logits (2Kp, TB) += W_fused^T (2Kp, TF) @ pred (TF, TB)
    logits_acc[...] += jnp.dot(wft_ref[...],
                               pred_ref[...].astype(matmul_dtype),
                               preferred_element_type=jnp.float32)

    # MSE partials: chunked ref reads bound live vregs; independent per-chunk
    # sums avoid a serial VALU add chain; diff in f32; beta/(B*F) applied once
    # at finalize (no per-element scale multiply).
    tf_rows = pred_ref.shape[0]
    parts = []
    for c in range(tf_rows // mse_chunk):
        rows = pl.ds(c * mse_chunk, mse_chunk)
        d = (pred_ref[rows, :].astype(jnp.float32)
             - true_ref[rows, :].astype(jnp.float32))
        parts.append(jnp.sum(d * d, axis=0, keepdims=True))
    total = parts[0]
    for part in parts[1:]:
        total = total + part
    mse_acc[...] += total

    @pl.when(f == pl.num_programs(1) - 1)
    def _finalize():
        x = logits_acc[...] + bias_ref[...]                  # (2Kp, TB)
        t = tgt_ref[...]
        # torch BCELoss on sigmoid(x) with each log clamped at -100:
        #   t * min(softplus(-x), 100) + (1 - t) * min(softplus(x), 100)
        e = jnp.log(1.0 + jnp.exp(-jnp.abs(x)))              # shared EUP term
        sp_pos = jnp.minimum(jnp.maximum(x, 0.0) + e, 100.0)
        sp_neg = jnp.minimum(jnp.maximum(-x, 0.0) + e, 100.0)
        bce = t * sp_neg + (1.0 - t) * sp_pos
        # coeff rows carry gamma/(B*K) | alpha/(B*K) | 0 (padded rows).
        partial = (jnp.sum(bce * coeff_ref[...])
                   + mse_scale * jnp.sum(mse_acc[...]))
        out_ref[...] = jnp.broadcast_to(boost * partial, out_ref.shape)


def npi_loss_pallas(pred, true, target, wd, bd, ws, bs,
                    discrim_coeff, style_coeff, similarity_coeff,
                    loss_boosting_coeff, *, matmul_dtype=jnp.bfloat16):
    """pred/true: (N, M, 1, B); target: (1, M, 2, B); head weights (N*M, M), biases (1, M)."""
    N, M, _, B = pred.shape
    F = N * M
    K = M

    gamma = float(discrim_coeff)
    alpha = float(style_coeff)
    beta = float(similarity_coeff)
    boost = float(loss_boosting_coeff)

    # ---- geometry ----
    tf, Fp = _pick_f_chunk(F)                  # F chunk (sublanes / inner grid)
    nf = Fp // tf
    if B % LANE == 0:                          # lane-dense batch blocks
        tb = 2 * LANE if B % (2 * LANE) == 0 else LANE
    else:
        tb = B                                 # full-B block (tiny / ragged B)
    nb = B // tb
    mse_chunk = LANE if (tf % LANE == 0 and tf > LANE) else tf

    # ---- activation streams: native F-major views, source dtype, no copies ----
    pred_fm = pred.reshape(F, B)
    true_fm = true.reshape(F, B)
    if Fp != F:                                # only when F is not a multiple of 8
        pred_fm = jnp.pad(pred_fm, ((0, Fp - F), (0, 0)))
        true_fm = jnp.pad(true_fm, ((0, Fp - F), (0, 0)))

    # ---- tiny fused dual-head parameters (host-side transpose/pad/cast) ----
    Kf = 2 * K
    Kfp = _round_up(Kf, SUBLANE)
    wft = jnp.concatenate([wd, ws], axis=1).T.astype(matmul_dtype)      # (2K, F)
    wft = jnp.pad(wft, ((0, Kfp - Kf), (0, Fp - F)))
    bias = jnp.concatenate([bd, bs], axis=1).reshape(Kf, 1).astype(jnp.float32)
    bias = jnp.pad(bias, ((0, Kfp - Kf), (0, 0)))
    tgt = jnp.transpose(target[0], (1, 0, 2)).reshape(Kf, B).astype(jnp.float32)
    tgt = jnp.pad(tgt, ((0, Kfp - Kf), (0, 0)))
    coeff = jnp.concatenate([
        jnp.full((K, 1), gamma / (B * K), jnp.float32),      # discrim rows
        jnp.full((K, 1), alpha / (B * K), jnp.float32),      # style rows
        jnp.zeros((Kfp - Kf, 1), jnp.float32)], axis=0)      # padded rows -> 0

    # ---- explicit VMEM budget (honest on v5e's 16 MiB / v7x's 32 MiB scoped
    #      defaults); footprint accounts for (8,128) tile padding ----
    in_bytes = jnp.dtype(pred.dtype).itemsize
    w_bytes = jnp.dtype(matmul_dtype).itemsize
    tbp = _round_up(tb, LANE)
    est = (2 * 2 * tf * tbp * in_bytes         # pred + true, double-buffered
           + 2 * Kfp * tf * w_bytes            # W^T chunk, double-buffered
           + 2 * Kfp * tbp * 4                 # fused targets
           + 4 * Kfp * LANE * 4                # bias + coeff
           + (Kfp + SUBLANE) * tbp * 4         # logits + MSE scratch
           + 2 * LANE * 4)                     # output block
    vmem_limit = int(min(48 * 1024 * 1024, max(16 * 1024 * 1024, 2 * est)))

    kernel = functools.partial(
        _npi_loss_kernel, boost=boost, mse_scale=beta / (B * F),
        matmul_dtype=matmul_dtype, mse_chunk=mse_chunk)

    out = pl.pallas_call(
        kernel,
        out_shape=jax.ShapeDtypeStruct((nb, 1, LANE), jnp.float32),
        grid_spec=pltpu.PrefetchScalarGridSpec(
            num_scalar_prefetch=0,
            grid=(nb, nf),                                    # (batch, F-chunks)
            in_specs=[
                pl.BlockSpec((tf, tb), lambda b, f: (f, b)),      # pred (F-major)
                pl.BlockSpec((tf, tb), lambda b, f: (f, b)),      # true
                pl.BlockSpec((Kfp, tf), lambda b, f: (0, f)),     # fused W^T chunk
                pl.BlockSpec((Kfp, tb), lambda b, f: (0, b)),     # fused targets
                pl.BlockSpec((Kfp, 1), lambda b, f: (0, 0)),      # fused bias
                pl.BlockSpec((Kfp, 1), lambda b, f: (0, 0)),      # BCE row coeffs
            ],
            out_specs=pl.BlockSpec((1, 1, LANE), lambda b, f: (b, 0, 0)),
            scratch_shapes=[
                pltpu.VMEM((Kfp, tb), jnp.float32),   # fused-logits accumulator
                pltpu.VMEM((1, tb), jnp.float32),     # raw squared-error accumulator
            ],
        ),
        compiler_params=pltpu.CompilerParams(
            dimension_semantics=("parallel", "arbitrary"),
            vmem_limit_bytes=vmem_limit),
    )(pred_fm, true_fm, wft, tgt, bias, coeff)

    # Per-batch-block partial losses (already boosted) -> final scalar.
    return jnp.sum(out[:, 0, 0])


def npi_loss_reference(pred, true, target, wd, bd, ws, bs,
                       gamma, alpha, beta, boost):
    """Pure-JAX reference with torch BCELoss semantics (sigmoid + log clamp at -100)."""
    N, M, _, B = pred.shape
    F = N * M
    p = pred.reshape(F, B).astype(jnp.float32)
    t = true.reshape(F, B).astype(jnp.float32)
    tg = target[0].astype(jnp.float32)                          # (M, 2, B)

    gen_prob = jax.nn.sigmoid(jnp.dot(p.T, wd, precision="highest") + bd)
    sty_prob = jax.nn.sigmoid(jnp.dot(p.T, ws, precision="highest") + bs)

    def bce(prob, tgt):
        lp = jnp.maximum(jnp.log(prob), -100.0)
        l1 = jnp.maximum(jnp.log(1.0 - prob), -100.0)
        return -jnp.mean(tgt * lp + (1.0 - tgt) * l1)

    discrim = gamma * bce(gen_prob, tg[:, 0, :].T)
    style = alpha * bce(sty_prob, tg[:, 1, :].T)
    sim = beta * jnp.mean((p - t) ** 2)
    return boost * (discrim + style + sim)


if __name__ == "__main__":
    # Small shapes consistent with (n, m, 1, b) activations / (1, m, 2, b) targets.
    N, M, B = 8, 32, 2
    F, K = N * M, M

    discrim_coeff, style_coeff, similarity_coeff, loss_boosting_coeff = 10.0, 1.0, 1.0, 10000.0

    key = jax.random.PRNGKey(0)
    k1, k2, k3, k4, k5, k6, k7 = jax.random.split(key, 7)

    pred = jax.random.normal(k1, (N, M, 1, B), dtype=jnp.float32)
    true = pred + 0.1 * jax.random.normal(k2, (N, M, 1, B), dtype=jnp.float32)
    target = jax.random.uniform(k3, (1, M, 2, B), dtype=jnp.float32)

    # Deterministic synthetic classifier parameters (stand-ins for the external
    # discrim / style classifier models).
    wd = 0.05 * jax.random.normal(k4, (F, K), dtype=jnp.float32)
    bd = 0.01 * jax.random.normal(k5, (1, K), dtype=jnp.float32)
    ws = 0.05 * jax.random.normal(k6, (F, K), dtype=jnp.float32)
    bs = 0.01 * jax.random.normal(k7, (1, K), dtype=jnp.float32)

    ref = jax.block_until_ready(npi_loss_reference(
        pred, true, target, wd, bd, ws, bs,
        discrim_coeff, style_coeff, similarity_coeff, loss_boosting_coeff))

    # f32 MXU path: tight agreement with the pure-JAX reference.
    loss_f32 = jax.block_until_ready(npi_loss_pallas(
        pred, true, target, wd, bd, ws, bs,
        discrim_coeff, style_coeff, similarity_coeff, loss_boosting_coeff,
        matmul_dtype=jnp.float32))
    assert jnp.allclose(loss_f32, ref, rtol=2e-3), (loss_f32, ref)

    # Default production path: bf16 MXU operands, f32 accumulate / elementwise.
    loss_bf16 = jax.block_until_ready(npi_loss_pallas(
        pred, true, target, wd, bd, ws, bs,
        discrim_coeff, style_coeff, similarity_coeff, loss_boosting_coeff))
    assert jnp.allclose(loss_bf16, ref, rtol=2e-2), (loss_bf16, ref)

    print("KERNEL_OK")
</pallas_src>

<mosaic_0001>
module attributes {stable_mosaic.version = 11 : i64} {
  func.func @_npi_loss_kernel(%arg0: i32, %arg1: i32, %arg2: memref<256x2xf32, #tpu.memory_space<vmem>>, %arg3: memref<256x2xf32, #tpu.memory_space<vmem>>, %arg4: memref<64x256xf32, #tpu.memory_space<vmem>>, %arg5: memref<64x2xf32, #tpu.memory_space<vmem>>, %arg6: memref<64x1xf32, #tpu.memory_space<vmem>>, %arg7: memref<64x1xf32, #tpu.memory_space<vmem>>, %arg8: memref<1x1x128xf32, #tpu.memory_space<vmem>>, %arg9: memref<64x2xf32, #tpu.memory_space<vmem>>, %arg10: memref<1x2xf32, #tpu.memory_space<vmem>>) attributes {dimension_semantics = [#tpu.dimension_semantics<parallel>, #tpu.dimension_semantics<arbitrary>], iteration_bounds = array<i64: 1, 1>, scalar_prefetch = 0 : i64, scratch_operands = 2 : i64, tpu.core_type = #tpu.core_type<tc>, window_params = [{transform_indices = @transform_0, window_bounds = array<i64: 256, 2>}, {transform_indices = @transform_1, window_bounds = array<i64: 256, 2>}, {transform_indices = @transform_2, window_bounds = array<i64: 64, 256>}, {transform_indices = @transform_3, window_bounds = array<i64: 64, 2>}, {pipeline_mode = #tpu.pipeline_mode<synchronous>, transform_indices = @transform_4, window_bounds = array<i64: 64, 1>}, {pipeline_mode = #tpu.pipeline_mode<synchronous>, transform_indices = @transform_5, window_bounds = array<i64: 64, 1>}, {transform_indices = @transform_6, window_bounds = array<i64: 1, 1, 128>}]} {
    %c0_i32 = arith.constant 0 : i32
    %0 = arith.cmpi eq, %arg1, %c0_i32 : i32
    %1 = arith.extui %0 : i1 to i32
    %c0_i32_0 = arith.constant 0 : i32
    %2 = arith.cmpi ne, %1, %c0_i32_0 : i32
    scf.if %2 {
      %cst_23 = arith.constant 0.000000e+00 : f32
      %28 = vector.broadcast %cst_23 : f32 to vector<64x2xf32>
      %c0_24 = arith.constant 0 : index
      %c0_25 = arith.constant 0 : index
      %29 = vector.load %arg9[%c0_24, %c0_25] : memref<64x2xf32, #tpu.memory_space<vmem>>, vector<64x2xf32>
      tpu.vector_store %arg9[%c0_24, %c0_25], %28 {strides = array<i32>} : memref<64x2xf32, #tpu.memory_space<vmem>>, vector<64x2xf32>,
      %cst_26 = arith.constant 0.000000e+00 : f32
      %30 = vector.broadcast %cst_26 : f32 to vector<1x2xf32>
      %c0_27 = arith.constant 0 : index
      %c0_28 = arith.constant 0 : index
      %31 = vector.load %arg10[%c0_27, %c0_28] : memref<1x2xf32, #tpu.memory_space<vmem>>, vector<1x2xf32>
      tpu.vector_store %arg10[%c0_27, %c0_28], %30 {strides = array<i32>} : memref<1x2xf32, #tpu.memory_space<vmem>>, vector<1x2xf32>,
    } else {
    }
    %c0 = arith.constant 0 : index
    %c0_1 = arith.constant 0 : index
    %3 = vector.load %arg9[%c0, %c0_1] : memref<64x2xf32, #tpu.memory_space<vmem>>, vector<64x2xf32>
    %c0_2 = arith.constant 0 : index
    %c0_3 = arith.constant 0 : index
    %4 = vector.load %arg4[%c0_2, %c0_3] : memref<64x256xf32, #tpu.memory_space<vmem>>, vector<64x256xf32>
    %c0_4 = arith.constant 0 : index
    %c0_5 = arith.constant 0 : index
    %5 = vector.load %arg2[%c0_4, %c0_5] : memref<256x2xf32, #tpu.memory_space<vmem>>, vector<256x2xf32>
    %cst = arith.constant dense<0.000000e+00> : vector<64x2xf32>
    %6 = tpu.matmul %4, %5, %cst {dimension_numbers = #tpu.dot_dimension_numbers<[1], [0], [0], [1], [0, 0, 1, 1], [], []>} : vector<64x256xf32>, vector<256x2xf32>, vector<64x2xf32> -> vector<64x2xf32>
    %7 = arith.addf %3, %6 : vector<64x2xf32>
    %c0_6 = arith.constant 0 : index
    %c0_7 = arith.constant 0 : index
    %8 = vector.load %arg9[%c0_6, %c0_7] : memref<64x2xf32, #tpu.memory_space<vmem>>, vector<64x2xf32>
    tpu.vector_store %arg9[%c0_6, %c0_7], %7 {strides = array<i32>} : memref<64x2xf32, #tpu.memory_space<vmem>>, vector<64x2xf32>,
    %c0_8 = arith.constant 0 : index
    %c0_9 = arith.constant 0 : index
    %9 = vector.load %arg2[%c0_8, %c0_9] : memref<256x2xf32, #tpu.memory_space<vmem>>, vector<128x2xf32>
    %c0_10 = arith.constant 0 : index
    %c0_11 = arith.constant 0 : index
    %10 = vector.load %arg3[%c0_10, %c0_11] : memref<256x2xf32, #tpu.memory_space<vmem>>, vector<128x2xf32>
    %11 = arith.subf %9, %10 : vector<128x2xf32>
    %12 = arith.mulf %11, %11 : vector<128x2xf32>
    %cst_12 = arith.constant dense<0.000000e+00> : vector<2xf32>
    %13 = vector.multi_reduction <add>, %12, %cst_12 [0] : vector<128x2xf32> to vector<2xf32>
    %14 = vector.shape_cast %13 : vector<2xf32> to vector<1x2xf32>
    %c128 = arith.constant 128 : index
    %c0_13 = arith.constant 0 : index
    %15 = vector.load %arg2[%c128, %c0_13] : memref<256x2xf32, #tpu.memory_space<vmem>>, vector<128x2xf32>
    %c128_14 = arith.constant 128 : index
    %c0_15 = arith.constant 0 : index
    %16 = vector.load %arg3[%c128_14, %c0_15] : memref<256x2xf32, #tpu.memory_space<vmem>>, vector<128x2xf32>
    %17 = arith.subf %15, %16 : vector<128x2xf32>
    %18 = arith.mulf %17, %17 : vector<128x2xf32>
    %cst_16 = arith.constant dense<0.000000e+00> : vector<2xf32>
    %19 = vector.multi_reduction <add>, %18, %cst_16 [0] : vector<128x2xf32> to vector<2xf32>
    %20 = vector.shape_cast %19 : vector<2xf32> to vector<1x2xf32>
    %21 = arith.addf %14, %20 : vector<1x2xf32>
    %c0_17 = arith.constant 0 : index
    %c0_18 = arith.constant 0 : index
    %22 = vector.load %arg10[%c0_17, %c0_18] : memref<1x2xf32, #tpu.memory_space<vmem>>, vector<1x2xf32>
    %23 = arith.addf %22, %21 : vector<1x2xf32>
    %c0_19 = arith.constant 0 : index
    %c0_20 = arith.constant 0 : index
    %24 = vector.load %arg10[%c0_19, %c0_20] : memref<1x2xf32, #tpu.memory_space<vmem>>, vector<1x2xf32>
    tpu.vector_store %arg10[%c0_19, %c0_20], %23 {strides = array<i32>} : memref<1x2xf32, #tpu.memory_space<vmem>>, vector<1x2xf32>,
    %c0_i32_21 = arith.constant 0 : i32
    %25 = arith.cmpi eq, %arg1, %c0_i32_21 : i32
    %26 = arith.extui %25 : i1 to i32
    %c0_i32_22 = arith.constant 0 : i32
    %27 = arith.cmpi ne, %26, %c0_i32_22 : i32
    scf.if %27 {
      %c0_23 = arith.constant 0 : index
      %c0_24 = arith.constant 0 : index
      %28 = vector.load %arg9[%c0_23, %c0_24] : memref<64x2xf32, #tpu.memory_space<vmem>>, vector<64x2xf32>
      %c0_25 = arith.constant 0 : index
      %c0_26 = arith.constant 0 : index
      %29 = vector.load %arg6[%c0_25, %c0_26] : memref<64x1xf32, #tpu.memory_space<vmem>>, vector<64x1xf32>
      %30 = vector.broadcast %29 : vector<64x1xf32> to vector<64x2xf32>
      %31 = arith.addf %28, %30 : vector<64x2xf32>
      %c0_27 = arith.constant 0 : index
      %c0_28 = arith.constant 0 : index
      %32 = vector.load %arg5[%c0_27, %c0_28] : memref<64x2xf32, #tpu.memory_space<vmem>>, vector<64x2xf32>
      %33 = math.absf %31 : vector<64x2xf32>
      %cst_29 = arith.constant 0.000000e+00 : f32
      %34 = vector.broadcast %cst_29 : f32 to vector<64x2xf32>
      %35 = arith.subf %34, %33 : vector<64x2xf32>
      %36 = math.exp %35 : vector<64x2xf32>
      %cst_30 = arith.constant 1.000000e+00 : f32
      %37 = vector.broadcast %cst_30 : f32 to vector<64x2xf32>
      %38 = arith.addf %37, %36 : vector<64x2xf32>
      %39 = math.log %38 : vector<64x2xf32>
      %cst_31 = arith.constant 0.000000e+00 : f32
      %40 = vector.broadcast %cst_31 : f32 to vector<64x2xf32>
      %41 = arith.maximumf %31, %40 : vector<64x2xf32>
      %42 = arith.addf %41, %39 : vector<64x2xf32>
      %cst_32 = arith.constant 1.000000e+02 : f32
      %43 = vector.broadcast %cst_32 : f32 to vector<64x2xf32>
      %44 = arith.minimumf %42, %43 : vector<64x2xf32>
      %cst_33 = arith.constant 0.000000e+00 : f32
      %45 = vector.broadcast %cst_33 : f32 to vector<64x2xf32>
      %46 = arith.subf %45, %31 : vector<64x2xf32>
      %cst_34 = arith.constant 0.000000e+00 : f32
      %47 = vector.broadcast %cst_34 : f32 to vector<64x2xf32>
      %48 = arith.maximumf %46, %47 : vector<64x2xf32>
      %49 = arith.addf %48, %39 : vector<64x2xf32>
      %cst_35 = arith.constant 1.000000e+02 : f32
      %50 = vector.broadcast %cst_35 : f32 to vector<64x2xf32>
      %51 = arith.minimumf %49, %50 : vector<64x2xf32>
      %52 = arith.mulf %32, %51 : vector<64x2xf32>
      %cst_36 = arith.constant 1.000000e+00 : f32
      %53 = vector.broadcast %cst_36 : f32 to vector<64x2xf32>
      %54 = arith.subf %53, %32 : vector<64x2xf32>
      %55 = arith.mulf %54, %44 : vector<64x2xf32>
      %56 = arith.addf %52, %55 : vector<64x2xf32>
      %c0_37 = arith.constant 0 : index
      %c0_38 = arith.constant 0 : index
      %57 = vector.load %arg7[%c0_37, %c0_38] : memref<64x1xf32, #tpu.memory_space<vmem>>, vector<64x1xf32>
      %58 = vector.broadcast %57 : vector<64x1xf32> to vector<64x2xf32>
      %59 = arith.mulf %56, %58 : vector<64x2xf32>
      %60 = vector.shape_cast %59 : vector<64x2xf32> to vector<1x64x2xf32>
      %cst_39 = arith.constant dense<0.000000e+00> : vector<1xf32>
      %61 = vector.multi_reduction <add>, %60, %cst_39 [1, 2] : vector<1x64x2xf32> to vector<1xf32>
      %62 = vector.shape_cast %61 : vector<1xf32> to vector<1x1x1xf32>
      %63 = vector.extract %62[0, 0, 0] : f32 from vector<1x1x1xf32>
      %c0_40 = arith.constant 0 : index
      %c0_41 = arith.constant 0 : index
      %64 = vector.load %arg10[%c0_40, %c0_41] : memref<1x2xf32, #tpu.memory_space<vmem>>, vector<1x2xf32>
      %65 = vector.shape_cast %64 : vector<1x2xf32> to vector<1x1x2xf32>
      %cst_42 = arith.constant dense<0.000000e+00> : vector<1xf32>
      %66 = vector.multi_reduction <add>, %65, %cst_42 [1, 2] : vector<1x1x2xf32> to vector<1xf32>
      %67 = vector.shape_cast %66 : vector<1xf32> to vector<1x1x1xf32>
      %68 = vector.extract %67[0, 0, 0] : f32 from vector<1x1x1xf32>
      %cst_43 = arith.constant 0.001953125 : f32
      %69 = arith.mulf %cst_43, %68 : f32
      %70 = arith.addf %63, %69 : f32
      %cst_44 = arith.constant 1.000000e+04 : f32
      %71 = arith.mulf %cst_44, %70 : f32
      %72 = vector.broadcast %71 : f32 to vector<1x1x128xf32>
      %c0_45 = arith.constant 0 : index
      %c0_46 = arith.constant 0 : index
      %c0_47 = arith.constant 0 : index
      %73 = vector.load %arg8[%c0_45, %c0_46, %c0_47] : memref<1x1x128xf32, #tpu.memory_space<vmem>>, vector<1x1x128xf32>
      tpu.vector_store %arg8[%c0_45, %c0_46, %c0_47], %72 {strides = array<i32>} : memref<1x1x128xf32, #tpu.memory_space<vmem>>, vector<1x1x128xf32>,
    } else {
    }
    return
  }
  func.func @transform_0(%arg0: i32, %arg1: i32) -> (i32, i32) {
    %c0_i32 = arith.constant 0 : i32
    return %arg1, %arg0 : i32, i32
  }
  func.func @transform_1(%arg0: i32, %arg1: i32) -> (i32, i32) {
    %c0_i32 = arith.constant 0 : i32
    return %arg1, %arg0 : i32, i32
  }
  func.func @transform_2(%arg0: i32, %arg1: i32) -> (i32, i32) {
    %c0_i32 = arith.constant 0 : i32
    %c0_i32_0 = arith.constant 0 : i32
    return %c0_i32, %arg1 : i32, i32
  }
  func.func @transform_3(%arg0: i32, %arg1: i32) -> (i32, i32) {
    %c0_i32 = arith.constant 0 : i32
    %c0_i32_0 = arith.constant 0 : i32
    return %c0_i32, %arg0 : i32, i32
  }
  func.func @transform_4(%arg0: i32, %arg1: i32) -> (i32, i32) {
    %c0_i32 = arith.constant 0 : i32
    %c0_i32_0 = arith.constant 0 : i32
    %c0_i32_1 = arith.constant 0 : i32
    return %c0_i32, %c0_i32_0 : i32, i32
  }
  func.func @transform_5(%arg0: i32, %arg1: i32) -> (i32, i32) {
    %c0_i32 = arith.constant 0 : i32
    %c0_i32_0 = arith.constant 0 : i32
    %c0_i32_1 = arith.constant 0 : i32
    return %c0_i32, %c0_i32_0 : i32, i32
  }
  func.func @transform_6(%arg0: i32, %arg1: i32) -> (i32, i32, i32) {
    %c0_i32 = arith.constant 0 : i32
    %c0_i32_0 = arith.constant 0 : i32
    %c0_i32_1 = arith.constant 0 : i32
    return %arg0, %c0_i32, %c0_i32_0 : i32, i32, i32
  }
}

</mosaic_0001>

<llo_original>
// kernel: tpu_custom_call.1
$region0: #{tpu_custom_call.1}
  #allocation0 [shape = 'u32[]', space=smem, size = 0x4, offset = 0x4, fixed_abs, tag = 'smem constant byte address 0x4 - core index']
  #allocation1 [shape = 'u32[144,128]{1,0:T(1,128)}', space=vmem, size = 0x12000, scoped, tag = 'internal scratch']
  #allocation2 [shape = 'f32[64,2]{1,0:T(8,128)}', space=vmem, size = 0x8000, scoped, tag = 'scratch operand']
  #allocation3 [shape = 'f32[1,2]{1,0:T(1,128)}', space=vmem, size = 0x200, scoped, tag = 'scratch operand']
  %s0 = inlined_call_operand.vmem [shape: f32[256,2], index: 0, kind: input, shape index: {}]
  %s1 = inlined_call_operand.vmem [shape: f32[256,2], index: 1, kind: input, shape index: {}]
  %s2 = inlined_call_operand.vmem [shape: f32[64,256], index: 2, kind: input, shape index: {}]
  %s3 = inlined_call_operand.vmem [shape: f32[64,2], index: 3, kind: input, shape index: {}]
  %s4 = inlined_call_operand.vmem [shape: f32[64,1], index: 4, kind: input, shape index: {}]
  %s5 = inlined_call_operand.vmem [shape: f32[64,1], index: 5, kind: input, shape index: {}]
  %s6 = inlined_call_operand.hbm [shape: f32[1,1,128], index: 6, kind: output, shape index: {}]
  %s7 = sld [smem:[#allocation0]]
  $region42: #{tpu_custom_call.1} parent=0
    _
  %s9 = ssub.s32 1, %s7
  %s10 = scalar_select 0, %s9, %s7
  $region1: #{tpu_custom_call.1} parent=0
    #allocation4 [shape = 'u8[512]{0}', space=vmem, size = 0x400, scoped, tag = 'output window, operand 0, single buffered']
    #allocation5 [shape = 's32[1]{0}', space=sflag, size = 0x4, scoped, tag = 'scoped memory for tpu_custom_call.1']
    %11 = vsyncpa [#allocation5], 0
    // Predicated region
    $region2: #{tpu_custom_call.1} parent=1 // pred_check
      _
    $region3: #{tpu_custom_call.1} parent=1 // pred_check_branch
      %13 = sbr.rel (0) target = $region5
    $region4: #{tpu_custom_call.1} parent=1 // pred_region
      _
    $region5: #{tpu_custom_call.1} parent=1 // pred_fallthru
      _
    // Predicated region
    $region6: #{tpu_custom_call.1} parent=1 // pred_check
      _
    $region7: #{tpu_custom_call.1} parent=1 // pred_check_branch
      %15 = sbr.rel (0) target = $region9
    $region8: #{tpu_custom_call.1} parent=1 // pred_region
      _
    $region9: #{tpu_custom_call.1} parent=1 // pred_fallthru
      _
    // Predicated region
    $region10: #{tpu_custom_call.1} parent=1 // pred_check
      _
    $region11: #{tpu_custom_call.1} parent=1 // pred_check_branch
      %17 = sbr.rel (0) target = $region13
    $region12: #{tpu_custom_call.1} parent=1 // pred_region
      _
    $region13: #{tpu_custom_call.1} parent=1 // pred_fallthru
      _
    // Predicated region
    $region14: #{tpu_custom_call.1} parent=1 // pred_check
      _
    $region15: #{tpu_custom_call.1} parent=1 // pred_check_branch
      %19 = sbr.rel (0) target = $region17
    $region16: #{tpu_custom_call.1} parent=1 // pred_region
      _
    $region17: #{tpu_custom_call.1} parent=1 // pred_fallthru
      _
    // Predicated region
    $region18: #{tpu_custom_call.1} parent=1 // pred_check
      _
    $region19: #{tpu_custom_call.1} parent=1 // pred_check_branch
      %21 = sbr.rel (0) target = $region21
    $region20: #{tpu_custom_call.1} parent=1 // pred_region
      _
    $region21: #{tpu_custom_call.1} parent=1 // pred_fallthru
      _
    // Predicated region
    $region22: #{tpu_custom_call.1} parent=1 // pred_check
      _
    $region23: #{tpu_custom_call.1} parent=1 // pred_check_branch
      %23 = sbr.rel (0) target = $region25
    $region24: #{tpu_custom_call.1} parent=1 // pred_region
      _
    $region25: #{tpu_custom_call.1} parent=1 // pred_fallthru
      _
    %p24 = scmp.eq.s32.totalorder 0, 0
    // Predicated region
    $region26: #{tpu_custom_call.1} parent=1 // pred_check
      %p25 = pneg %p24
    $region27: #{tpu_custom_call.1} parent=1 // pred_check_branch
      %27 = sbr.rel (%p25) target = $region29
    $region28: #{tpu_custom_call.1} parent=1 // pred_region
      %vm28 = vcmask 15360
      %29 = vst.msk [vmem:[#allocation2] sm:$0xff] %vm28, 0.0
      %30 = vst.msk [vmem:[#allocation2 + $0x8] sm:$0xff] %vm28, 0.0
      %31 = vst.msk [vmem:[#allocation2 + $0x10] sm:$0xff] %vm28, 0.0
      %32 = vst.msk [vmem:[#allocation2 + $0x18] sm:$0xff] %vm28, 0.0
      %33 = vst.msk [vmem:[#allocation2 + $0x20] sm:$0xff] %vm28, 0.0
      %34 = vst.msk [vmem:[#allocation2 + $0x28] sm:$0xff] %vm28, 0.0
      %35 = vst.msk [vmem:[#allocation2 + $0x30] sm:$0xff] %vm28, 0.0
      %36 = vst.msk [vmem:[#allocation2 + $0x38] sm:$0xff] %vm28, 0.0
      %vm37 = vcmask 8192
      %38 = vst.msk [vmem:[#allocation3] sm:$0x1] %vm37, 0.0
    $region29: #{tpu_custom_call.1} parent=1 // pred_fallthru
      _
    %v39 = vld [vmem:[#allocation2] sm:$0xff]
    %v40 = vld [vmem:[#allocation2 + $0x8] sm:$0xff]
    %v41 = vld [vmem:[#allocation2 + $0x10] sm:$0xff]
    %v42 = vld [vmem:[#allocation2 + $0x18] sm:$0xff]
    %v43 = vld [vmem:[#allocation2 + $0x20] sm:$0xff]
    %v44 = vld [vmem:[#allocation2 + $0x28] sm:$0xff]
    %v45 = vld [vmem:[#allocation2 + $0x30] sm:$0xff]
    %v46 = vld [vmem:[#allocation2 + $0x38] sm:$0xff]
    %v47 = vld [vmem:[%s2] sm:$0xff]
    %v48 = vld [vmem:[%s2 + $0x8] sm:$0xff]
    %v49 = vld [vmem:[%s2 + $0x10] sm:$0xff]
    %v50 = vld [vmem:[%s2 + $0x18] sm:$0xff]
    %v51 = vld [vmem:[%s2 + $0x20] sm:$0xff]
    %v52 = vld [vmem:[%s2 + $0x28] sm:$0xff]
    %v53 = vld [vmem:[%s2 + $0x30] sm:$0xff]
    %v54 = vld [vmem:[%s2 + $0x38] sm:$0xff]
    %v55 = vld [vmem:[%s2 + $0x40] sm:$0xff]
    %v56 = vld [vmem:[%s2 + $0x48] sm:$0xff]
    %v57 = vld [vmem:[%s2 + $0x50] sm:$0xff]
    %v58 = vld [vmem:[%s2 + $0x58] sm:$0xff]
    %v59 = vld [vmem:[%s2 + $0x60] sm:$0xff]
    %v60 = vld [vmem:[%s2 + $0x68] sm:$0xff]
    %v61 = vld [vmem:[%s2 + $0x70] sm:$0xff]
    %v62 = vld [vmem:[%s2 + $0x78] sm:$0xff]
    %v63 = vld [vmem:[%s0] sm:$0xff]
    %v64 = vld [vmem:[%s0 + $0x8] sm:$0xff]
    %v65 = vld [vmem:[%s0 + $0x10] sm:$0xff]
    %v66 = vld [vmem:[%s0 + $0x18] sm:$0xff]
    %v67 = vld [vmem:[%s0 + $0x20] sm:$0xff]
    %v68 = vld [vmem:[%s0 + $0x28] sm:$0xff]
    %v69 = vld [vmem:[%s0 + $0x30] sm:$0xff]
    %v70 = vld [vmem:[%s0 + $0x38] sm:$0xff]
    %v71 = vld [vmem:[%s0 + $0x40] sm:$0xff]
    %v72 = vld [vmem:[%s0 + $0x48] sm:$0xff]
    %v73 = vld [vmem:[%s0 + $0x50] sm:$0xff]
    %v74 = vld [vmem:[%s0 + $0x58] sm:$0xff]
    %v75 = vld [vmem:[%s0 + $0x60] sm:$0xff]
    %v76 = vld [vmem:[%s0 + $0x68] sm:$0xff]
    %v77 = vld [vmem:[%s0 + $0x70] sm:$0xff]
    %v78 = vld [vmem:[%s0 + $0x78] sm:$0xff]
    %v79 = vld [vmem:[%s0 + $0x80] sm:$0xff]
    %v80 = vld [vmem:[%s0 + $0x88] sm:$0xff]
    %v81 = vld [vmem:[%s0 + $0x90] sm:$0xff]
    %v82 = vld [vmem:[%s0 + $0x98] sm:$0xff]
    %v83 = vld [vmem:[%s0 + $0xa0] sm:$0xff]
    %v84 = vld [vmem:[%s0 + $0xa8] sm:$0xff]
    %v85 = vld [vmem:[%s0 + $0xb0] sm:$0xff]
    %v86 = vld [vmem:[%s0 + $0xb8] sm:$0xff]
    %v87 = vld [vmem:[%s0 + $0xc0] sm:$0xff]
    %v88 = vld [vmem:[%s0 + $0xc8] sm:$0xff]
    %v89 = vld [vmem:[%s0 + $0xd0] sm:$0xff]
    %v90 = vld [vmem:[%s0 + $0xd8] sm:$0xff]
    %v91 = vld [vmem:[%s0 + $0xe0] sm:$0xff]
    %v92 = vld [vmem:[%s0 + $0xe8] sm:$0xff]
    %v93 = vld [vmem:[%s0 + $0xf0] sm:$0xff]
    %v94 = vld [vmem:[%s0 + $0xf8] sm:$0xff]
    %95 = vmatprep.subr.mxu0 0.0
    %96 = vmatpush1.msra.mxu0 %v78
    %97 = vmatprep.subr.mxu0 0.0
    %98 = vmatpush1.msra.mxu0 %v77
    %99 = vmatprep.subr.mxu0 0.0
    %100 = vmatpush1.msra.mxu0 %v76
    %101 = vmatprep.subr.mxu0 0.0
    %102 = vmatpush1.msra.mxu0 %v75
    %103 = vmatprep.subr.mxu0 0.0
    %104 = vmatpush1.msra.mxu0 %v74
    %105 = vmatprep.subr.mxu0 0.0
    %106 = vmatpush1.msra.mxu0 %v73
    %107 = vmatprep.subr.mxu0 0.0
    %108 = vmatpush1.msra.mxu0 %v72
    %109 = vmatprep.subr.mxu0 0.0
    %110 = vmatpush1.msra.mxu0 %v71
    %111 = vmatprep.subr.mxu0 0.0
    %112 = vmatpush1.msra.mxu0 %v70
    %113 = vmatprep.subr.mxu0 0.0
    %114 = vmatpush1.msra.mxu0 %v69
    %115 = vmatprep.subr.mxu0 0.0
    %116 = vmatpush1.msra.mxu0 %v68
    %117 = vmatprep.subr.mxu0 0.0
    %118 = vmatpush1.msra.mxu0 %v67
    %119 = vmatprep.subr.mxu0 0.0
    %120 = vmatpush1.msra.mxu0 %v66
    %121 = vmatprep.subr.mxu0 0.0
    %122 = vmatpush1.msra.mxu0 %v65
    %123 = vmatprep.subr.mxu0 0.0
    %124 = vmatpush1.msra.mxu0 %v64
    %125 = vmatprep.subr.mxu0 0.0
    %126 = vmatpush1.msra.mxu0 %v63
    %127 = vmatprep.subr.mxu0 0.0
    %128 = vmatpush2.msra.mxu0 %v94
    %129 = vmatprep.subr.mxu0 0.0
    %130 = vmatpush2.msra.mxu0 %v93
    %131 = vmatprep.subr.mxu0 0.0
    %132 = vmatpush2.msra.mxu0 %v92
    %133 = vmatprep.subr.mxu0 0.0
    %134 = vmatpush2.msra.mxu0 %v91
    %135 = vmatprep.subr.mxu0 0.0
    %136 = vmatpush2.msra.mxu0 %v90
    %137 = vmatprep.subr.mxu0 0.0
    %138 = vmatpush2.msra.mxu0 %v89
    %139 = vmatprep.subr.mxu0 0.0
    %140 = vmatpush2.msra.mxu0 %v88
    %141 = vmatprep.subr.mxu0 0.0
    %142 = vmatpush2.msra.mxu0 %v87
    %143 = vmatprep.subr.mxu0 0.0
    %144 = vmatpush2.msra.mxu0 %v86
    %145 = vmatprep.subr.mxu0 0.0
    %146 = vmatpush2.msra.mxu0 %v85
    %147 = vmatprep.subr.mxu0 0.0
    %148 = vmatpush2.msra.mxu0 %v84
    %149 = vmatprep.subr.mxu0 0.0
    %150 = vmatpush2.msra.mxu0 %v83
    %151 = vmatprep.subr.mxu0 0.0
    %152 = vmatpush2.msra.mxu0 %v82
    %153 = vmatprep.subr.mxu0 0.0
    %154 = vmatpush2.msra.mxu0 %v81
    %155 = vmatprep.subr.mxu0 0.0
    %156 = vmatpush2.msra.mxu0 %v80
    %157 = vmatprep.subr.mxu0 0.0
    %158 = vmatpush2.msra.mxu0 %v79
    %159 = vmatprep.mubr.f32.mxu0 %v48
    %160 = vmatmul.mubr.f32.gmra.mxu0 %v47
    %v161 = vpop.f32.mrf.mxu0
    %v162 = vadd.f32 0.0, %v161
    %v163 = vpop.f32.mrf.mxu0
    %164 = vmatprep.mubr.f32.mxu0 %v50
    %165 = vmatmul.mubr.f32.gmra.mxu0 %v49
    %v166 = vpop.f32.mrf.mxu0
    %v167 = vadd.f32 0.0, %v166
    %v168 = vpop.f32.mrf.mxu0
    %169 = vmatprep.mubr.f32.mxu0 %v52
    %170 = vmatmul.mubr.f32.gmra.mxu0 %v51
    %v171 = vpop.f32.mrf.mxu0
    %v172 = vadd.f32 0.0, %v171
    %v173 = vpop.f32.mrf.mxu0
    %174 = vmatprep.mubr.f32.mxu0 %v54
    %175 = vmatmul.mubr.f32.gmra.mxu0 %v53
    %v176 = vpop.f32.mrf.mxu0
    %v177 = vadd.f32 0.0, %v176
    %v178 = vpop.f32.mrf.mxu0
    %179 = vmatprep.mubr.f32.mxu0 %v56
    %180 = vmatmul.mubr.f32.gmra.mxu0 %v55
    %v181 = vpop.f32.mrf.mxu0
    %v182 = vadd.f32 0.0, %v181
    %v183 = vpop.f32.mrf.mxu0
    %184 = vmatprep.mubr.f32.mxu0 %v58
    %185 = vmatmul.mubr.f32.gmra.mxu0 %v57
    %v186 = vpop.f32.mrf.mxu0
    %v187 = vadd.f32 0.0, %v186
    %v188 = vpop.f32.mrf.mxu0
    %189 = vmatprep.mubr.f32.mxu0 %v60
    %190 = vmatmul.mubr.f32.gmra.mxu0 %v59
    %v191 = vpop.f32.mrf.mxu0
    %v192 = vadd.f32 0.0, %v191
    %v193 = vpop.f32.mrf.mxu0
    %194 = vmatprep.mubr.f32.mxu0 %v62
    %195 = vmatmul.mubr.f32.gmra.mxu0 %v61
    %v196 = vpop.f32.mrf.mxu0
    %v197 = vadd.f32 0.0, %v196
    %v198 = vpop.f32.mrf.mxu0
    %199 = vdwg.mxu0
    %v200 = vadd.f32 %v39, %v162
    %v201 = vadd.f32 %v40, %v167
    %v202 = vadd.f32 %v41, %v172
    %v203 = vadd.f32 %v42, %v177
    %v204 = vadd.f32 %v43, %v182
    %v205 = vadd.f32 %v44, %v187
    %v206 = vadd.f32 %v45, %v192
    %v207 = vadd.f32 %v46, %v197
    %vm208 = vcmask 15360
    %209 = vst.msk [vmem:[#allocation2] sm:$0xff] %vm208, %v200
    %210 = vst.msk [vmem:[#allocation2 + $0x8] sm:$0xff] %vm208, %v201
    %211 = vst.msk [vmem:[#allocation2 + $0x10] sm:$0xff] %vm208, %v202
    %212 = vst.msk [vmem:[#allocation2 + $0x18] sm:$0xff] %vm208, %v203
    %213 = vst.msk [vmem:[#allocation2 + $0x20] sm:$0xff] %vm208, %v204
    %214 = vst.msk [vmem:[#allocation2 + $0x28] sm:$0xff] %vm208, %v205
    %215 = vst.msk [vmem:[#allocation2 + $0x30] sm:$0xff] %vm208, %v206
    %216 = vst.msk [vmem:[#allocation2 + $0x38] sm:$0xff] %vm208, %v207
    %v217 = vld [vmem:[%s0] sm:$0xff]
    %v218 = vld [vmem:[%s0 + $0x8] sm:$0xff]
    %v219 = vld [vmem:[%s0 + $0x10] sm:$0xff]
    %v220 = vld [vmem:[%s0 + $0x18] sm:$0xff]
    %v221 = vld [vmem:[%s0 + $0x20] sm:$0xff]
    %v222 = vld [vmem:[%s0 + $0x28] sm:$0xff]
    %v223 = vld [vmem:[%s0 + $0x30] sm:$0xff]
    %v224 = vld [vmem:[%s0 + $0x38] sm:$0xff]
    %v225 = vld [vmem:[%s0 + $0x40] sm:$0xff]
    %v226 = vld [vmem:[%s0 + $0x48] sm:$0xff]
    %v227 = vld [vmem:[%s0 + $0x50] sm:$0xff]
    %v228 = vld [vmem:[%s0 + $0x58] sm:$0xff]
    %v229 = vld [vmem:[%s0 + $0x60] sm:$0xff]
    %v230 = vld [vmem:[%s0 + $0x68] sm:$0xff]
    %v231 = vld [vmem:[%s0 + $0x70] sm:$0xff]
    %v232 = vld [vmem:[%s0 + $0x78] sm:$0xff]
    %v233 = vld [vmem:[%s1] sm:$0xff]
    %v234 = vld [vmem:[%s1 + $0x8] sm:$0xff]
    %v235 = vld [vmem:[%s1 + $0x10] sm:$0xff]
    %v236 = vld [vmem:[%s1 + $0x18] sm:$0xff]
    %v237 = vld [vmem:[%s1 + $0x20] sm:$0xff]
    %v238 = vld [vmem:[%s1 + $0x28] sm:$0xff]
    %v239 = vld [vmem:[%s1 + $0x30] sm:$0xff]
    %v240 = vld [vmem:[%s1 + $0x38] sm:$0xff]
    %v241 = vld [vmem:[%s1 + $0x40] sm:$0xff]
    %v242 = vld [vmem:[%s1 + $0x48] sm:$0xff]
    %v243 = vld [vmem:[%s1 + $0x50] sm:$0xff]
    %v244 = vld [vmem:[%s1 + $0x58] sm:$0xff]
    %v245 = vld [vmem:[%s1 + $0x60] sm:$0xff]
    %v246 = vld [vmem:[%s1 + $0x68] sm:$0xff]
    %v247 = vld [vmem:[%s1 + $0x70] sm:$0xff]
    %v248 = vld [vmem:[%s1 + $0x78] sm:$0xff]
    %v249 = vsub.f32 %v217, %v233
    %v250 = vsub.f32 %v218, %v234
    %v251 = vsub.f32 %v219, %v235
    %v252 = vsub.f32 %v220, %v236
    %v253 = vsub.f32 %v221, %v237
    %v254 = vsub.f32 %v222, %v238
    %v255 = vsub.f32 %v223, %v239
    %v256 = vsub.f32 %v224, %v240
    %v257 = vsub.f32 %v225, %v241
    %v258 = vsub.f32 %v226, %v242
    %v259 = vsub.f32 %v227, %v243
    %v260 = vsub.f32 %v228, %v244
    %v261 = vsub.f32 %v229, %v245
    %v262 = vsub.f32 %v230, %v246
    %v263 = vsub.f32 %v231, %v247
    %v264 = vsub.f32 %v232, %v248
    %v265 = vmul.f32 %v249, %v249
    %v266 = vmul.f32 %v250, %v250
    %v267 = vmul.f32 %v251, %v251
    %v268 = vmul.f32 %v252, %v252
    %v269 = vmul.f32 %v253, %v253
    %v270 = vmul.f32 %v254, %v254
    %v271 = vmul.f32 %v255, %v255
    %v272 = vmul.f32 %v256, %v256
    %v273 = vmul.f32 %v257, %v257
    %v274 = vmul.f32 %v258, %v258
    %v275 = vmul.f32 %v259, %v259
    %v276 = vmul.f32 %v260, %v260
    %v277 = vmul.f32 %v261, %v261
    %v278 = vmul.f32 %v262, %v262
    %v279 = vmul.f32 %v263, %v263
    %v280 = vmul.f32 %v264, %v264
    %v281 = vsel %vm208, %v265, 0.0
    %v282 = vsel %vm208, %v266, 0.0
    %v283 = vadd.f32 %v281, %v282
    %v284 = vsel %vm208, %v267, 0.0
    %v285 = vadd.f32 %v283, %v284
    %v286 = vsel %vm208, %v268, 0.0
    %v287 = vadd.f32 %v285, %v286
    %v288 = vsel %vm208, %v269, 0.0
    %v289 = vadd.f32 %v287, %v288
    %v290 = vsel %vm208, %v270, 0.0
    %v291 = vadd.f32 %v289, %v290
    %v292 = vsel %vm208, %v271, 0.0
    %v293 = vadd.f32 %v291, %v292
    %v294 = vsel %vm208, %v272, 0.0
    %v295 = vadd.f32 %v293, %v294
    %v296 = vsel %vm208, %v273, 0.0
    %v297 = vadd.f32 %v295, %v296
    %v298 = vsel %vm208, %v274, 0.0
    %v299 = vadd.f32 %v297, %v298
    %v300 = vsel %vm208, %v275, 0.0
    %v301 = vadd.f32 %v299, %v300
    %v302 = vsel %vm208, %v276, 0.0
    %v303 = vadd.f32 %v301, %v302
    %v304 = vsel %vm208, %v277, 0.0
    %v305 = vadd.f32 %v303, %v304
    %v306 = vsel %vm208, %v278, 0.0
    %v307 = vadd.f32 %v305, %v306
    %v308 = vsel %vm208, %v279, 0.0
    %v309 = vadd.f32 %v307, %v308
    %v310 = vsel %vm208, %v280, 0.0
    %v311 = vadd.f32 %v309, %v310
    %v312 = vrot.slane %v311, 4
    %v313 = vadd.f32 %v311, %v312
    %v314 = vrot.slane %v313, 2
    %v315 = vadd.f32 %v313, %v314
    %v316 = vrot.slane %v315, 1
    %v317 = vadd.f32 %v315, %v316
    %v318 = vld [vmem:[%s0 + $0x80] sm:$0xff]
    %v319 = vld [vmem:[%s0 + $0x88] sm:$0xff]
    %v320 = vld [vmem:[%s0 + $0x90] sm:$0xff]
    %v321 = vld [vmem:[%s0 + $0x98] sm:$0xff]
    %v322 = vld [vmem:[%s0 + $0xa0] sm:$0xff]
    %v323 = vld [vmem:[%s0 + $0xa8] sm:$0xff]
    %v324 = vld [vmem:[%s0 + $0xb0] sm:$0xff]
    %v325 = vld [vmem:[%s0 + $0xb8] sm:$0xff]
    %v326 = vld [vmem:[%s0 + $0xc0] sm:$0xff]
    %v327 = vld [vmem:[%s0 + $0xc8] sm:$0xff]
    %v328 = vld [vmem:[%s0 + $0xd0] sm:$0xff]
    %v329 = vld [vmem:[%s0 + $0xd8] sm:$0xff]
    %v330 = vld [vmem:[%s0 + $0xe0] sm:$0xff]
    %v331 = vld [vmem:[%s0 + $0xe8] sm:$0xff]
    %v332 = vld [vmem:[%s0 + $0xf0] sm:$0xff]
    %v333 = vld [vmem:[%s0 + $0xf8] sm:$0xff]
    %v334 = vld [vmem:[%s1 + $0x80] sm:$0xff]
    %v335 = vld [vmem:[%s1 + $0x88] sm:$0xff]
    %v336 = vld [vmem:[%s1 + $0x90] sm:$0xff]
    %v337 = vld [vmem:[%s1 + $0x98] sm:$0xff]
    %v338 = vld [vmem:[%s1 + $0xa0] sm:$0xff]
    %v339 = vld [vmem:[%s1 + $0xa8] sm:$0xff]
    %v340 = vld [vmem:[%s1 + $0xb0] sm:$0xff]
    %v341 = vld [vmem:[%s1 + $0xb8] sm:$0xff]
    %v342 = vld [vmem:[%s1 + $0xc0] sm:$0xff]
    %v343 = vld [vmem:[%s1 + $0xc8] sm:$0xff]
    %v344 = vld [vmem:[%s1 + $0xd0] sm:$0xff]
    %v345 = vld [vmem:[%s1 + $0xd8] sm:$0xff]
    %v346 = vld [vmem:[%s1 + $0xe0] sm:$0xff]
    %v347 = vld [vmem:[%s1 + $0xe8] sm:$0xff]
    %v348 = vld [vmem:[%s1 + $0xf0] sm:$0xff]
    %v349 = vld [vmem:[%s1 + $0xf8] sm:$0xff]
    %v350 = vsub.f32 %v318, %v334
    %v351 = vsub.f32 %v319, %v335
    %v352 = vsub.f32 %v320, %v336
    %v353 = vsub.f32 %v321, %v337
    %v354 = vsub.f32 %v322, %v338
    %v355 = vsub.f32 %v323, %v339
    %v356 = vsub.f32 %v324, %v340
    %v357 = vsub.f32 %v325, %v341
    %v358 = vsub.f32 %v326, %v342
    %v359 = vsub.f32 %v327, %v343
    %v360 = vsub.f32 %v328, %v344
    %v361 = vsub.f32 %v329, %v345
    %v362 = vsub.f32 %v330, %v346
    %v363 = vsub.f32 %v331, %v347
    %v364 = vsub.f32 %v332, %v348
    %v365 = vsub.f32 %v333, %v349
    %v366 = vmul.f32 %v350, %v350
    %v367 = vmul.f32 %v351, %v351
    %v368 = vmul.f32 %v352, %v352
    %v369 = vmul.f32 %v353, %v353
    %v370 = vmul.f32 %v354, %v354
    %v371 = vmul.f32 %v355, %v355
    %v372 = vmul.f32 %v356, %v356
    %v373 = vmul.f32 %v357, %v357
    %v374 = vmul.f32 %v358, %v358
    %v375 = vmul.f32 %v359, %v359
    %v376 = vmul.f32 %v360, %v360
    %v377 = vmul.f32 %v361, %v361
    %v378 = vmul.f32 %v362, %v362
    %v379 = vmul.f32 %v363, %v363
    %v380 = vmul.f32 %v364, %v364
    %v381 = vmul.f32 %v365, %v365
    %v382 = vsel %vm208, %v366, 0.0
    %v383 = vsel %vm208, %v367, 0.0
    %v384 = vadd.f32 %v382, %v383
    %v385 = vsel %vm208, %v368, 0.0
    %v386 = vadd.f32 %v384, %v385
    %v387 = vsel %vm208, %v369, 0.0
    %v388 = vadd.f32 %v386, %v387
    %v389 = vsel %vm208, %v370, 0.0
    %v390 = vadd.f32 %v388, %v389
    %v391 = vsel %vm208, %v371, 0.0
    %v392 = vadd.f32 %v390, %v391
    %v393 = vsel %vm208, %v372, 0.0
    %v394 = vadd.f32 %v392, %v393
    %v395 = vsel %vm208, %v373, 0.0
    %v396 = vadd.f32 %v394, %v395
    %v397 = vsel %vm208, %v374, 0.0
    %v398 = vadd.f32 %v396, %v397
    %v399 = vsel %vm208, %v375, 0.0
    %v400 = vadd.f32 %v398, %v399
    %v401 = vsel %vm208, %v376, 0.0
    %v402 = vadd.f32 %v400, %v401
    %v403 = vsel %vm208, %v377, 0.0
    %v404 = vadd.f32 %v402, %v403
    %v405 = vsel %vm208, %v378, 0.0
    %v406 = vadd.f32 %v404, %v405
    %v407 = vsel %vm208, %v379, 0.0
    %v408 = vadd.f32 %v406, %v407
    %v409 = vsel %vm208, %v380, 0.0
    %v410 = vadd.f32 %v408, %v409
    %v411 = vsel %vm208, %v381, 0.0
    %v412 = vadd.f32 %v410, %v411
    %v413 = vrot.slane %v412, 4
    %v414 = vadd.f32 %v412, %v413
    %v415 = vrot.slane %v414, 2
    %v416 = vadd.f32 %v414, %v415
    %v417 = vrot.slane %v416, 1
    %v418 = vadd.f32 %v416, %v417
    %v419 = vadd.f32 %v317, %v418
    %v420 = vld [vmem:[#allocation3] sm:$0x1]
    %v421 = vadd.f32 %v420, %v419
    %vm422 = vcmask 8192
    %423 = vst.msk [vmem:[#allocation3] sm:$0x1] %vm422, %v421
    // Predicated region
    $region30: #{tpu_custom_call.1} parent=1 // pred_check
      %p424 = pneg %p24
    $region31: #{tpu_custom_call.1} parent=1 // pred_check_branch
      %426 = sbr.rel (%p424) target = $region33
    $region32: #{tpu_custom_call.1} parent=1 // pred_region
      %v427 = vld [vmem:[#allocation2] sm:$0xff]
      %v428 = vld [vmem:[#allocation2 + $0x8] sm:$0xff]
      %v429 = vld [vmem:[#allocation2 + $0x10] sm:$0xff]
      %v430 = vld [vmem:[#allocation2 + $0x18] sm:$0xff]
      %v431 = vld [vmem:[#allocation2 + $0x20] sm:$0xff]
      %v432 = vld [vmem:[#allocation2 + $0x28] sm:$0xff]
      %v433 = vld [vmem:[#allocation2 + $0x30] sm:$0xff]
      %v434 = vld [vmem:[#allocation2 + $0x38] sm:$0xff]
      %v435 = vld [vmem:[%s4] sm:$0xff]
      %v436 = vld [vmem:[%s4 + $0x8] sm:$0xff]
      %v437 = vld [vmem:[%s4 + $0x10] sm:$0xff]
      %v438 = vld [vmem:[%s4 + $0x18] sm:$0xff]
      %v439 = vld [vmem:[%s4 + $0x20] sm:$0xff]
      %v440 = vld [vmem:[%s4 + $0x28] sm:$0xff]
      %v441 = vld [vmem:[%s4 + $0x30] sm:$0xff]
      %v442 = vld [vmem:[%s4 + $0x38] sm:$0xff]
      %444 = vset.pattern.permute.xlu0 0
      %445 = vperm.xlu0 %444, %v435
      %v446 = vpop.permute.xlu0 %445
      %449 = vset.pattern.permute.xlu0 0
      %450 = vperm.xlu0 %449, %v436
      %v451 = vpop.permute.xlu0 %450
      %454 = vset.pattern.permute.xlu0 0
      %455 = vperm.xlu0 %454, %v437
      %v456 = vpop.permute.xlu0 %455
      %459 = vset.pattern.permute.xlu0 0
      %460 = vperm.xlu0 %459, %v438
      %v461 = vpop.permute.xlu0 %460
      %464 = vset.pattern.permute.xlu0 0
      %465 = vperm.xlu0 %464, %v439
      %v466 = vpop.permute.xlu0 %465
      %469 = vset.pattern.permute.xlu0 0
      %470 = vperm.xlu0 %469, %v440
      %v471 = vpop.permute.xlu0 %470
      %474 = vset.pattern.permute.xlu0 0
      %475 = vperm.xlu0 %474, %v441
      %v476 = vpop.permute.xlu0 %475
      %479 = vset.pattern.permute.xlu0 0
      %480 = vperm.xlu0 %479, %v442
      %v481 = vpop.permute.xlu0 %480
      %v483 = vadd.f32 %v427, %v446
      %v484 = vadd.f32 %v428, %v451
      %v485 = vadd.f32 %v429, %v456
      %v486 = vadd.f32 %v430, %v461
      %v487 = vadd.f32 %v431, %v466
      %v488 = vadd.f32 %v432, %v471
      %v489 = vadd.f32 %v433, %v476
      %v490 = vadd.f32 %v434, %v481
      %v491 = vld [vmem:[%s3] sm:$0xff]
      %v492 = vld [vmem:[%s3 + $0x8] sm:$0xff]
      %v493 = vld [vmem:[%s3 + $0x10] sm:$0xff]
      %v494 = vld [vmem:[%s3 + $0x18] sm:$0xff]
      %v495 = vld [vmem:[%s3 + $0x20] sm:$0xff]
      %v496 = vld [vmem:[%s3 + $0x28] sm:$0xff]
      %v497 = vld [vmem:[%s3 + $0x30] sm:$0xff]
      %v498 = vld [vmem:[%s3 + $0x38] sm:$0xff]
      %v499 = vand.u32 2147483647, %v483
      %v500 = vand.u32 2147483647, %v484
      %v501 = vand.u32 2147483647, %v485
      %v502 = vand.u32 2147483647, %v486
      %v503 = vand.u32 2147483647, %v487
      %v504 = vand.u32 2147483647, %v488
      %v505 = vand.u32 2147483647, %v489
      %v506 = vand.u32 2147483647, %v490
      %v507 = vsub.f32 0.0, %v499
      %v508 = vsub.f32 0.0, %v500
      %v509 = vsub.f32 0.0, %v501
      %v510 = vsub.f32 0.0, %v502
      %v511 = vsub.f32 0.0, %v503
      %v512 = vsub.f32 0.0, %v504
      %v513 = vsub.f32 0.0, %v505
      %v514 = vsub.f32 0.0, %v506
      %v515 = vmul.f32 %v507, 1.442695
      %v516 = vpow.pop %v515
      %v517 = vmul.f32 %v508, 1.442695
      %v518 = vpow.pop %v517
      %v519 = vmul.f32 %v509, 1.442695
      %v520 = vpow.pop %v519
      %v521 = vmul.f32 %v510, 1.442695
      %v522 = vpow.pop %v521
      %v523 = vmul.f32 %v511, 1.442695
      %v524 = vpow.pop %v523
      %v525 = vmul.f32 %v512, 1.442695
      %v526 = vpow.pop %v525
      %v527 = vmul.f32 %v513, 1.442695
      %v528 = vpow.pop %v527
      %v529 = vmul.f32 %v514, 1.442695
      %v530 = vpow.pop %v529
      %v531 = vadd.f32 %v516, 1.0
      %v532 = vadd.f32 %v518, 1.0
      %v533 = vadd.f32 %v520, 1.0
      %v534 = vadd.f32 %v522, 1.0
      %v535 = vadd.f32 %v524, 1.0
      %v536 = vadd.f32 %v526, 1.0
      %v537 = vadd.f32 %v528, 1.0
      %v538 = vadd.f32 %v530, 1.0
      %v539 = vlog2.pop %v531
      %v540 = vmul.f32 %v539, 0.6931472
      %v541 = vlog2.pop %v532
      %v542 = vmul.f32 %v541, 0.6931472
      %v543 = vlog2.pop %v533
      %v544 = vmul.f32 %v543, 0.6931472
      %v545 = vlog2.pop %v534
      %v546 = vmul.f32 %v545, 0.6931472
      %v547 = vlog2.pop %v535
      %v548 = vmul.f32 %v547, 0.6931472
      %v549 = vlog2.pop %v536
      %v550 = vmul.f32 %v549, 0.6931472
      %v551 = vlog2.pop %v537
      %v552 = vmul.f32 %v551, 0.6931472
      %v553 = vlog2.pop %v538
      %v554 = vmul.f32 %v553, 0.6931472
      %v555 = vmax.f32 %v483, 0.0
      %v556 = vmax.f32 %v484, 0.0
      %v557 = vmax.f32 %v485, 0.0
      %v558 = vmax.f32 %v486, 0.0
      %v559 = vmax.f32 %v487, 0.0
      %v560 = vmax.f32 %v488, 0.0
      %v561 = vmax.f32 %v489, 0.0
      %v562 = vmax.f32 %v490, 0.0
      %v563 = vadd.f32 %v555, %v540
      %v564 = vadd.f32 %v556, %v542
      %v565 = vadd.f32 %v557, %v544
      %v566 = vadd.f32 %v558, %v546
      %v567 = vadd.f32 %v559, %v548
      %v568 = vadd.f32 %v560, %v550
      %v569 = vadd.f32 %v561, %v552
      %v570 = vadd.f32 %v562, %v554
      %v571 = vmin.f32 %v563, 100.0
      %v572 = vmin.f32 %v564, 100.0
      %v573 = vmin.f32 %v565, 100.0
      %v574 = vmin.f32 %v566, 100.0
      %v575 = vmin.f32 %v567, 100.0
      %v576 = vmin.f32 %v568, 100.0
      %v577 = vmin.f32 %v569, 100.0
      %v578 = vmin.f32 %v570, 100.0
      %v579 = vsub.f32 0.0, %v483
      %v580 = vsub.f32 0.0, %v484
      %v581 = vsub.f32 0.0, %v485
      %v582 = vsub.f32 0.0, %v486
      %v583 = vsub.f32 0.0, %v487
      %v584 = vsub.f32 0.0, %v488
      %v585 = vsub.f32 0.0, %v489
      %v586 = vsub.f32 0.0, %v490
      %v587 = vmax.f32 %v579, 0.0
      %v588 = vmax.f32 %v580, 0.0
      %v589 = vmax.f32 %v581, 0.0
      %v590 = vmax.f32 %v582, 0.0
      %v591 = vmax.f32 %v583, 0.0
      %v592 = vmax.f32 %v584, 0.0
      %v593 = vmax.f32 %v585, 0.0
      %v594 = vmax.f32 %v586, 0.0
      %v595 = vadd.f32 %v587, %v540
      %v596 = vadd.f32 %v588, %v542
      %v597 = vadd.f32 %v589, %v544
      %v598 = vadd.f32 %v590, %v546
      %v599 = vadd.f32 %v591, %v548
      %v600 = vadd.f32 %v592, %v550
      %v601 = vadd.f32 %v593, %v552
      %v602 = vadd.f32 %v594, %v554
      %v603 = vmin.f32 %v595, 100.0
      %v604 = vmin.f32 %v596, 100.0
      %v605 = vmin.f32 %v597, 100.0
      %v606 = vmin.f32 %v598, 100.0
      %v607 = vmin.f32 %v599, 100.0
      %v608 = vmin.f32 %v600, 100.0
      %v609 = vmin.f32 %v601, 100.0
      %v610 = vmin.f32 %v602, 100.0
      %v611 = vmul.f32 %v491, %v603
      %v612 = vmul.f32 %v492, %v604
      %v613 = vmul.f32 %v493, %v605
      %v614 = vmul.f32 %v494, %v606
      %v615 = vmul.f32 %v495, %v607
      %v616 = vmul.f32 %v496, %v608
      %v617 = vmul.f32 %v497, %v609
      %v618 = vmul.f32 %v498, %v610
      %v619 = vsub.f32 1.0, %v491
      %v620 = vsub.f32 1.0, %v492
      %v621 = vsub.f32 1.0, %v493
      %v622 = vsub.f32 1.0, %v494
      %v623 = vsub.f32 1.0, %v495
      %v624 = vsub.f32 1.0, %v496
      %v625 = vsub.f32 1.0, %v497
      %v626 = vsub.f32 1.0, %v498
      %v627 = vmul.f32 %v619, %v571
      %v628 = vmul.f32 %v620, %v572
      %v629 = vmul.f32 %v621, %v573
      %v630 = vmul.f32 %v622, %v574
      %v631 = vmul.f32 %v623, %v575
      %v632 = vmul.f32 %v624, %v576
      %v633 = vmul.f32 %v625, %v577
      %v634 = vmul.f32 %v626, %v578
      %v635 = vadd.f32 %v611, %v627
      %v636 = vadd.f32 %v612, %v628
      %v637 = vadd.f32 %v613, %v629
      %v638 = vadd.f32 %v614, %v630
      %v639 = vadd.f32 %v615, %v631
      %v640 = vadd.f32 %v616, %v632
      %v641 = vadd.f32 %v617, %v633
      %v642 = vadd.f32 %v618, %v634
      %v643 = vld [vmem:[%s5] sm:$0xff]
      %v644 = vld [vmem:[%s5 + $0x8] sm:$0xff]
      %v645 = vld [vmem:[%s5 + $0x10] sm:$0xff]
      %v646 = vld [vmem:[%s5 + $0x18] sm:$0xff]
      %v647 = vld [vmem:[%s5 + $0x20] sm:$0xff]
      %v648 = vld [vmem:[%s5 + $0x28] sm:$0xff]
      %v649 = vld [vmem:[%s5 + $0x30] sm:$0xff]
      %v650 = vld [vmem:[%s5 + $0x38] sm:$0xff]
      %652 = vset.pattern.permute.xlu0 0
      %653 = vperm.xlu0 %652, %v643
      %v654 = vpop.permute.xlu0 %653
      %657 = vset.pattern.permute.xlu0 0
      %658 = vperm.xlu0 %657, %v644
      %v659 = vpop.permute.xlu0 %658
      %662 = vset.pattern.permute.xlu0 0
      %663 = vperm.xlu0 %662, %v645
      %v664 = vpop.permute.xlu0 %663
      %667 = vset.pattern.permute.xlu0 0
      %668 = vperm.xlu0 %667, %v646
      %v669 = vpop.permute.xlu0 %668
      %672 = vset.pattern.permute.xlu0 0
      %673 = vperm.xlu0 %672, %v647
      %v674 = vpop.permute.xlu0 %673
      %677 = vset.pattern.permute.xlu0 0
      %678 = vperm.xlu0 %677, %v648
      %v679 = vpop.permute.xlu0 %678
      %682 = vset.pattern.permute.xlu0 0
      %683 = vperm.xlu0 %682, %v649
      %v684 = vpop.permute.xlu0 %683
      %687 = vset.pattern.permute.xlu0 0
      %688 = vperm.xlu0 %687, %v650
      %v689 = vpop.permute.xlu0 %688
      %v691 = vmul.f32 %v635, %v654
      %v692 = vmul.f32 %v636, %v659
      %v693 = vmul.f32 %v637, %v664
      %v694 = vmul.f32 %v638, %v669
      %v695 = vmul.f32 %v639, %v674
      %v696 = vmul.f32 %v640, %v679
      %v697 = vmul.f32 %v641, %v684
      %v698 = vmul.f32 %v642, %v689
      %v699 = vsel %vm208, %v691, 0.0
      %v700 = vsel %vm208, %v692, 0.0
      %v701 = vadd.f32 %v699, %v700
      %v702 = vsel %vm208, %v693, 0.0
      %v703 = vadd.f32 %v701, %v702
      %v704 = vsel %vm208, %v694, 0.0
      %v705 = vadd.f32 %v703, %v704
      %v706 = vsel %vm208, %v695, 0.0
      %v707 = vadd.f32 %v705, %v706
      %v708 = vsel %vm208, %v696, 0.0
      %v709 = vadd.f32 %v707, %v708
      %v710 = vsel %vm208, %v697, 0.0
      %v711 = vadd.f32 %v709, %v710
      %v712 = vsel %vm208, %v698, 0.0
      %v713 = vadd.f32 %v711, %v712
      %714 = vadd.xlane.f32.xlu0 %v713
      %v715 = vpop.xlane.xlu0 %714
      %v716 = vrot.slane %v715, 4
      %v717 = vadd.f32 %v715, %v716
      %v718 = vrot.slane %v717, 2
      %v719 = vadd.f32 %v717, %v718
      %v720 = vrot.slane %v719, 1
      %v721 = vadd.f32 %v719, %v720
      %s722 = vtos %v721
      %v723 = vld [vmem:[#allocation3] sm:$0x1]
      %v724 = vsel %vm422, %v723, 0.0
      %725 = vadd.xlane.f32.xlu0 %v724
      %v726 = vpop.xlane.xlu0 %725
      %v727 = vrot.slane %v726, 4
      %v728 = vadd.f32 %v726, %v727
      %v729 = vrot.slane %v728, 2
      %v730 = vadd.f32 %v728, %v729
      %v731 = vrot.slane %v730, 1
      %v732 = vadd.f32 %v730, %v731
      %s733 = vtos %v732
      %s734 = smul.f32 %s733, 0.001953125
      %s735 = sadd.f32 %s722, %s734
      %s736 = smul.f32 %s735, 10000.0
      %v737 = vstv %s736
      %738 = vst [vmem:[#allocation4] sm:$0x1] %v737
    $region33: #{tpu_custom_call.1} parent=1 // pred_fallthru
      _
    // Predicated region
    $region34: #{tpu_custom_call.1} parent=1 // pred_check
      _
    $region35: #{tpu_custom_call.1} parent=1 // pred_check_branch
      %740 = sbr.rel (0) target = $region37
    $region36: #{tpu_custom_call.1} parent=1 // pred_region
      %s742 = ssub.s32 16, 16
      %743 = vsyncadd [#allocation5], %s742
      %s745 = sshll.u32 [#allocation4], 4
      %s746 = int_to_ptr.vmem [resolvable:$true] %s745
      %748 = dma.vmem_to_hbm [thread:$0]  %s746, 16, %s6, [#allocation5]
    $region37: #{tpu_custom_call.1} parent=1 // pred_fallthru
      _
    // Predicated region
    $region38: #{tpu_custom_call.1} parent=1 // pred_check
      _
    $region39: #{tpu_custom_call.1} parent=1 // pred_check_branch
      %750 = sbr.rel (0) target = $region41
    $region40: #{tpu_custom_call.1} parent=1 // pred_region
      %751 = dma.done [#allocation5], 16
    $region41: #{tpu_custom_call.1} parent=1 // pred_fallthru
      _
    %752 = vsyncpa [#allocation5], 1

</llo_original>
